<compile_context>
chip_gen: v6e
topology: v6e:2x2x1
jax: 0.10.0
libtpu: 0.0.40
codegen_flags: <defaults>
</compile_context>

<pallas_src>
import jax
import jax.numpy as jnp
from jax.experimental import pallas as pl
from jax.experimental.pallas import tpu as pltpu


def _round_up(x, m):
    return ((x + m - 1) // m) * m


def mean_pool_kernel(adj_ref, x_ref, o_ref, acc_ref, deg_ref):
    # adj_ref: (tm, tk)  adjacency tile for this (row-block, k-block)
    # x_ref:   (tk, tn)  feature tile for this (k-block, col-block)
    # o_ref:   (tm, tn)  pooled output tile (written only on the last k step)
    # acc_ref: (tm, tn)  f32 matmul accumulator (VMEM scratch)
    # deg_ref: (tm, 1)   f32 degree accumulator (VMEM scratch)
    k = pl.program_id(2)

    @pl.when(k == 0)
    def _():
        acc_ref[...] = jnp.zeros_like(acc_ref)
        deg_ref[...] = jnp.zeros_like(deg_ref)

    adj = adj_ref[...]

    # adj @ x on the MXU, accumulated in f32 across k tiles.
    acc_ref[...] += jnp.dot(adj, x_ref[...], preferred_element_type=jnp.float32)

    # Partial row degrees for this k tile (XLU reduction -> free slot next to
    # the MXU; zero-padded columns contribute 0).
    deg_ref[...] += jnp.sum(adj.astype(jnp.float32), axis=1, keepdims=True)

    @pl.when(k == pl.num_programs(2) - 1)
    def _():
        deg = deg_ref[...]
        # Zero-degree guard: applied only after the FULL degree is accumulated.
        deg = deg + (deg == 0).astype(jnp.float32)
        inv = pl.reciprocal(deg, approx=False)  # exact (keeps 1e-5-level accuracy)
        o_ref[...] = (acc_ref[...] * inv).astype(o_ref.dtype)


def mean_pooling(inputs, adj, *, tm=256, tn=512, tk=512):
    """Pallas equivalent of MeanPooling.forward(inputs, adj).

    inputs: (N, F) float32 (or bf16)
    adj:    (N, N) dense adjacency, float32 (or bf16 for 2x less HBM traffic)
    returns (N, F) in inputs.dtype
    """
    N, F = inputs.shape
    assert adj.shape == (N, N), "adj must be (N, N) with N = inputs.shape[0]"

    # Shrink tiles for small problems while keeping (8, 128) alignment.
    tm = min(tm, _round_up(N, 8))      # output rows (MXU M dim)
    tk = min(tk, _round_up(N, 128))    # contraction / neighbor axis (lanes of adj)
    tn = min(tn, _round_up(F, 128))    # feature columns (lanes of x / out)

    n_rows = _round_up(N, tm)          # padded M
    n_cols = _round_up(N, tk)          # padded K
    f_pad = _round_up(F, tn)           # padded F

    adj_p = adj
    if (n_rows, n_cols) != (N, N):
        # Padded rows -> degree 0 -> guarded -> zero output rows (sliced off).
        # Padded cols -> zero contribution to both matmul and degree.
        adj_p = jnp.pad(adj, ((0, n_rows - N), (0, n_cols - N)))
    x_p = inputs
    if (n_cols, f_pad) != (N, F):
        x_p = jnp.pad(inputs, ((0, n_cols - N), (0, f_pad - F)))

    grid = (n_rows // tm, f_pad // tn, n_cols // tk)

    out = pl.pallas_call(
        mean_pool_kernel,
        out_shape=jax.ShapeDtypeStruct((n_rows, f_pad), inputs.dtype),
        grid_spec=pltpu.PrefetchScalarGridSpec(
            num_scalar_prefetch=0,
            grid=grid,
            in_specs=[
                pl.BlockSpec((tm, tk), lambda i, j, k: (i, k)),  # adj tile
                pl.BlockSpec((tk, tn), lambda i, j, k: (k, j)),  # feature tile
            ],
            out_specs=pl.BlockSpec((tm, tn), lambda i, j, k: (i, j)),
            scratch_shapes=[
                pltpu.VMEM((tm, tn), jnp.float32),  # matmul accumulator
                pltpu.VMEM((tm, 1), jnp.float32),   # degree accumulator
            ],
        ),
        compiler_params=pltpu.CompilerParams(
            # i/j parallel -> shards across the 2 TensorCores on v7x;
            # only the reduction axis k is arbitrary.
            dimension_semantics=("parallel", "parallel", "arbitrary"),
            # Tiles above use only a few MiB; keep well inside v7x's 64 MiB.
            vmem_limit_bytes=32 * 1024 * 1024,
        ),
        cost_estimate=pl.CostEstimate(
            flops=2 * N * N * F,
            transcendentals=0,
            bytes_accessed=(adj.size * adj.dtype.itemsize
                            + inputs.size * inputs.dtype.itemsize
                            + N * F * inputs.dtype.itemsize),
        ),
    )(adj_p, x_p)

    if (n_rows, f_pad) != (N, F):
        out = out[:N, :F]
    return out


def mean_pooling_ref(inputs, adj):
    deg = jnp.sum(adj, axis=1, keepdims=True)
    deg = deg + (deg == 0).astype(adj.dtype)
    return (adj @ inputs) / deg


if __name__ == "__main__":
    key = jax.random.PRNGKey(0)

    # --- Test 1: small, non-tile-aligned graph (exercises padding + guard) ---
    k1, k2, key = jax.random.split(key, 3)
    N, F = 20, 96
    inputs = jax.random.normal(k1, (N, F), dtype=jnp.float32)
    adj = (jax.random.uniform(k2, (N, N)) < 0.3).astype(jnp.float32)
    adj = adj.at[3, :].set(0.0)  # zero-degree row -> exercises the guard

    out = jax.block_until_ready(mean_pooling(inputs, adj))
    ref = mean_pooling_ref(inputs, adj)
    assert out.shape == (N, F)
    assert jnp.allclose(out, ref, atol=1e-4, rtol=1e-4), "test 1 mismatch"

    # --- Test 2: larger graph with explicit small tiles (multi-step K accum,
    #             multi-tile i/j, output written only on last k) ---
    k3, k4, key = jax.random.split(key, 3)
    N2, F2 = 384, 256
    inputs2 = jax.random.normal(k3, (N2, F2), dtype=jnp.float32)
    adj2 = (jax.random.uniform(k4, (N2, N2)) < 0.1).astype(jnp.float32)
    adj2 = adj2.at[7, :].set(0.0)

    out2 = jax.block_until_ready(
        mean_pooling(inputs2, adj2, tm=128, tn=128, tk=128))  # grid = (3, 2, 3)
    ref2 = mean_pooling_ref(inputs2, adj2)
    assert out2.shape == (N2, F2)
    assert jnp.allclose(out2, ref2, atol=1e-4, rtol=1e-4), "test 2 mismatch"

    print("KERNEL_OK")
</pallas_src>

<mosaic_0001>
module attributes {stable_mosaic.version = 11 : i64} {
  func.func @mean_pool_kernel(%arg0: i32, %arg1: i32, %arg2: i32, %arg3: memref<24x128xf32, #tpu.memory_space<vmem>>, %arg4: memref<128x128xf32, #tpu.memory_space<vmem>>, %arg5: memref<24x128xf32, #tpu.memory_space<vmem>>, %arg6: memref<24x128xf32, #tpu.memory_space<vmem>>, %arg7: memref<24x1xf32, #tpu.memory_space<vmem>>) attributes {dimension_semantics = [#tpu.dimension_semantics<parallel>, #tpu.dimension_semantics<parallel>, #tpu.dimension_semantics<arbitrary>], iteration_bounds = array<i64: 1, 1, 1>, scalar_prefetch = 0 : i64, scratch_operands = 2 : i64, tpu.core_type = #tpu.core_type<tc>, window_params = [{transform_indices = @transform_0, window_bounds = array<i64: 24, 128>}, {transform_indices = @transform_1, window_bounds = array<i64: 128, 128>}, {transform_indices = @transform_2, window_bounds = array<i64: 24, 128>}]} {
    %c0_i32 = arith.constant 0 : i32
    %0 = arith.cmpi eq, %arg2, %c0_i32 : i32
    %1 = arith.extui %0 : i1 to i32
    %c0_i32_0 = arith.constant 0 : i32
    %2 = arith.cmpi ne, %1, %c0_i32_0 : i32
    scf.if %2 {
      %cst_15 = arith.constant 0.000000e+00 : f32
      %17 = vector.broadcast %cst_15 : f32 to vector<24x128xf32>
      %c0_16 = arith.constant 0 : index
      %c0_17 = arith.constant 0 : index
      %18 = vector.load %arg6[%c0_16, %c0_17] : memref<24x128xf32, #tpu.memory_space<vmem>>, vector<24x128xf32>
      tpu.vector_store %arg6[%c0_16, %c0_17], %17 {strides = array<i32>} : memref<24x128xf32, #tpu.memory_space<vmem>>, vector<24x128xf32>,
      %cst_18 = arith.constant 0.000000e+00 : f32
      %19 = vector.broadcast %cst_18 : f32 to vector<24x1xf32>
      %c0_19 = arith.constant 0 : index
      %c0_20 = arith.constant 0 : index
      %20 = vector.load %arg7[%c0_19, %c0_20] : memref<24x1xf32, #tpu.memory_space<vmem>>, vector<24x1xf32>
      tpu.vector_store %arg7[%c0_19, %c0_20], %19 {strides = array<i32>} : memref<24x1xf32, #tpu.memory_space<vmem>>, vector<24x1xf32>,
    } else {
    }
    %c0 = arith.constant 0 : index
    %c0_1 = arith.constant 0 : index
    %3 = vector.load %arg3[%c0, %c0_1] : memref<24x128xf32, #tpu.memory_space<vmem>>, vector<24x128xf32>
    %c0_2 = arith.constant 0 : index
    %c0_3 = arith.constant 0 : index
    %4 = vector.load %arg6[%c0_2, %c0_3] : memref<24x128xf32, #tpu.memory_space<vmem>>, vector<24x128xf32>
    %c0_4 = arith.constant 0 : index
    %c0_5 = arith.constant 0 : index
    %5 = vector.load %arg4[%c0_4, %c0_5] : memref<128x128xf32, #tpu.memory_space<vmem>>, vector<128x128xf32>
    %cst = arith.constant dense<0.000000e+00> : vector<24x128xf32>
    %6 = tpu.matmul %3, %5, %cst {dimension_numbers = #tpu.dot_dimension_numbers<[1], [0], [0], [1], [0, 0, 1, 1], [], []>} : vector<24x128xf32>, vector<128x128xf32>, vector<24x128xf32> -> vector<24x128xf32>
    %7 = arith.addf %4, %6 : vector<24x128xf32>
    %c0_6 = arith.constant 0 : index
    %c0_7 = arith.constant 0 : index
    %8 = vector.load %arg6[%c0_6, %c0_7] : memref<24x128xf32, #tpu.memory_space<vmem>>, vector<24x128xf32>
    tpu.vector_store %arg6[%c0_6, %c0_7], %7 {strides = array<i32>} : memref<24x128xf32, #tpu.memory_space<vmem>>, vector<24x128xf32>,
    %c0_8 = arith.constant 0 : index
    %c0_9 = arith.constant 0 : index
    %9 = vector.load %arg7[%c0_8, %c0_9] : memref<24x1xf32, #tpu.memory_space<vmem>>, vector<24x1xf32>
    %cst_10 = arith.constant dense<0.000000e+00> : vector<24xf32>
    %10 = vector.multi_reduction <add>, %3, %cst_10 [1] : vector<24x128xf32> to vector<24xf32>
    %11 = vector.shape_cast %10 : vector<24xf32> to vector<24x1xf32>
    %12 = arith.addf %9, %11 : vector<24x1xf32>
    %c0_11 = arith.constant 0 : index
    %c0_12 = arith.constant 0 : index
    %13 = vector.load %arg7[%c0_11, %c0_12] : memref<24x1xf32, #tpu.memory_space<vmem>>, vector<24x1xf32>
    tpu.vector_store %arg7[%c0_11, %c0_12], %12 {strides = array<i32>} : memref<24x1xf32, #tpu.memory_space<vmem>>, vector<24x1xf32>,
    %c0_i32_13 = arith.constant 0 : i32
    %14 = arith.cmpi eq, %arg2, %c0_i32_13 : i32
    %15 = arith.extui %14 : i1 to i32
    %c0_i32_14 = arith.constant 0 : i32
    %16 = arith.cmpi ne, %15, %c0_i32_14 : i32
    scf.if %16 {
      %c0_15 = arith.constant 0 : index
      %c0_16 = arith.constant 0 : index
      %17 = vector.load %arg7[%c0_15, %c0_16] : memref<24x1xf32, #tpu.memory_space<vmem>>, vector<24x1xf32>
      %cst_17 = arith.constant 0.000000e+00 : f32
      %18 = vector.broadcast %cst_17 : f32 to vector<24x1xf32>
      %19 = arith.cmpf oeq, %17, %18 : vector<24x1xf32>
      %20 = arith.extui %19 : vector<24x1xi1> to vector<24x1xi32>
      %21 = arith.sitofp %20 : vector<24x1xi32> to vector<24x1xf32>
      %22 = arith.addf %17, %21 : vector<24x1xf32>
      %23 = tpu.reciprocal %22 : vector<24x1xf32> -> vector<24x1xf32>
      %c0_18 = arith.constant 0 : index
      %c0_19 = arith.constant 0 : index
      %24 = vector.load %arg6[%c0_18, %c0_19] : memref<24x128xf32, #tpu.memory_space<vmem>>, vector<24x128xf32>
      %25 = vector.broadcast %23 : vector<24x1xf32> to vector<24x128xf32>
      %26 = arith.mulf %24, %25 : vector<24x128xf32>
      %c0_20 = arith.constant 0 : index
      %c0_21 = arith.constant 0 : index
      %27 = vector.load %arg5[%c0_20, %c0_21] : memref<24x128xf32, #tpu.memory_space<vmem>>, vector<24x128xf32>
      tpu.vector_store %arg5[%c0_20, %c0_21], %26 {strides = array<i32>} : memref<24x128xf32, #tpu.memory_space<vmem>>, vector<24x128xf32>,
    } else {
    }
    return
  }
  func.func @transform_0(%arg0: i32, %arg1: i32, %arg2: i32) -> (i32, i32) {
    %c0_i32 = arith.constant 0 : i32
    return %arg0, %arg2 : i32, i32
  }
  func.func @transform_1(%arg0: i32, %arg1: i32, %arg2: i32) -> (i32, i32) {
    %c0_i32 = arith.constant 0 : i32
    return %arg2, %arg1 : i32, i32
  }
  func.func @transform_2(%arg0: i32, %arg1: i32, %arg2: i32) -> (i32, i32) {
    %c0_i32 = arith.constant 0 : i32
    return %arg0, %arg1 : i32, i32
  }
}

</mosaic_0001>

<llo_original>
// kernel: tpu_custom_call.1
$region0: #{tpu_custom_call.1}
  #allocation0 [shape = 'u32[]', space=smem, size = 0x4, offset = 0x4, fixed_abs, tag = 'smem constant byte address 0x4 - core index']
  #allocation1 [shape = 'u32[144,128]{1,0:T(1,128)}', space=vmem, size = 0x12000, scoped, tag = 'internal scratch']
  #allocation2 [shape = 'f32[24,128]{1,0:T(8,128)}', space=vmem, size = 0x3000, scoped, tag = 'scratch operand']
  #allocation3 [shape = 'f32[24,1]{1,0:T(8,128)}', space=vmem, size = 0x3000, scoped, tag = 'scratch operand']
  %s0 = inlined_call_operand.hbm [shape: f32[24,128], index: 0, kind: input, shape index: {}]
  %s1 = inlined_call_operand.hbm [shape: f32[128,128], index: 1, kind: input, shape index: {}]
  %s2 = inlined_call_operand.hbm [shape: f32[24,128], index: 2, kind: output, shape index: {}]
  %s3 = sld [smem:[#allocation0]]
  $region34: #{tpu_custom_call.1} parent=0
    _
  %s5 = ssub.s32 1, %s3
  %s6 = scalar_select 0, %s5, %s3
  $region1: #{tpu_custom_call.1} parent=0
    #allocation4 [shape = 'u8[12288]{0}', space=vmem, size = 0x3000, scoped, tag = 'input window, operand 0, single buffered']
    #allocation5 [shape = 's32[1]{0}', space=sflag, size = 0x4, scoped, tag = 'scoped memory for tpu_custom_call.1']
    #allocation6 [shape = 's32[1]{0}', space=sflag, size = 0x4, scoped, tag = 'scoped memory for tpu_custom_call.1']
    #allocation7 [shape = 'u8[65536]{0}', space=vmem, size = 0x10000, scoped, tag = 'input window, operand 1, single buffered']
    #allocation8 [shape = 's32[1]{0}', space=sflag, size = 0x4, scoped, tag = 'scoped memory for tpu_custom_call.1']
    #allocation9 [shape = 'u8[12288]{0}', space=vmem, size = 0x3000, scoped, tag = 'output window, operand 0, single buffered']
    %7 = vsyncpa [#allocation5], 0
    %8 = vsyncpa [#allocation8], 0
    %9 = vsyncpa [#allocation6], 0
    // Predicated region
    $region2: #{tpu_custom_call.1} parent=1 // pred_check
      _
    $region3: #{tpu_custom_call.1} parent=1 // pred_check_branch
      %11 = sbr.rel (0) target = $region5
    $region4: #{tpu_custom_call.1} parent=1 // pred_region
      %s13 = ssub.s32 384, 384
      %14 = vsyncadd [#allocation5], %s13
      %s15 = sshll.u32 [#allocation4], 4
      %s16 = int_to_ptr.vmem [resolvable:$true] %s15
      %21 = dma.hbm_to_vmem [thread:$0]  %s0, 384, %s16, [#allocation5], 128, 128, 8
    $region5: #{tpu_custom_call.1} parent=1 // pred_fallthru
      _
    // Predicated region
    $region6: #{tpu_custom_call.1} parent=1 // pred_check
      _
    $region7: #{tpu_custom_call.1} parent=1 // pred_check_branch
      %23 = sbr.rel (0) target = $region9
    $region8: #{tpu_custom_call.1} parent=1 // pred_region
      %s25 = ssub.s32 2048, 2048
      %26 = vsyncadd [#allocation8], %s25
      %s27 = sshll.u32 [#allocation7], 4
      %s28 = int_to_ptr.vmem [resolvable:$true] %s27
      %33 = dma.hbm_to_vmem [thread:$0]  %s1, 2048, %s28, [#allocation8], 128, 128, 8
    $region9: #{tpu_custom_call.1} parent=1 // pred_fallthru
      _
    // Predicated region
    $region10: #{tpu_custom_call.1} parent=1 // pred_check
      _
    $region11: #{tpu_custom_call.1} parent=1 // pred_check_branch
      %35 = sbr.rel (0) target = $region13
    $region12: #{tpu_custom_call.1} parent=1 // pred_region
      %36 = dma.done [#allocation5], 384
    $region13: #{tpu_custom_call.1} parent=1 // pred_fallthru
      _
    // Predicated region
    $region14: #{tpu_custom_call.1} parent=1 // pred_check
      _
    $region15: #{tpu_custom_call.1} parent=1 // pred_check_branch
      %38 = sbr.rel (0) target = $region17
    $region16: #{tpu_custom_call.1} parent=1 // pred_region
      %39 = dma.done [#allocation8], 2048
    $region17: #{tpu_custom_call.1} parent=1 // pred_fallthru
      _
    %p40 = scmp.eq.s32.totalorder 0, 0
    // Predicated region
    $region18: #{tpu_custom_call.1} parent=1 // pred_check
      %p41 = pneg %p40
    $region19: #{tpu_custom_call.1} parent=1 // pred_check_branch
      %43 = sbr.rel (%p41) target = $region21
    $region20: #{tpu_custom_call.1} parent=1 // pred_region
      %44 = vst [vmem:[#allocation2] sm:$0xff] 0.0
      %45 = vst [vmem:[#allocation2 + $0x8] sm:$0xff] 0.0
      %46 = vst [vmem:[#allocation2 + $0x10] sm:$0xff] 0.0
      %vm47 = vcmask 7168
      %48 = vst.msk [vmem:[#allocation3] sm:$0xff] %vm47, 0.0
      %49 = vst.msk [vmem:[#allocation3 + $0x8] sm:$0xff] %vm47, 0.0
      %50 = vst.msk [vmem:[#allocation3 + $0x10] sm:$0xff] %vm47, 0.0
    $region21: #{tpu_custom_call.1} parent=1 // pred_fallthru
      _
    %v51 = vld [vmem:[#allocation4] sm:$0xff]
    %v52 = vld [vmem:[#allocation4 + $0x8] sm:$0xff]
    %v53 = vld [vmem:[#allocation4 + $0x10] sm:$0xff]
    %v54 = vld [vmem:[#allocation2] sm:$0xff]
    %v55 = vld [vmem:[#allocation2 + $0x8] sm:$0xff]
    %v56 = vld [vmem:[#allocation2 + $0x10] sm:$0xff]
    %v57 = vld [vmem:[#allocation7] sm:$0xff]
    %v58 = vld [vmem:[#allocation7 + $0x8] sm:$0xff]
    %v59 = vld [vmem:[#allocation7 + $0x10] sm:$0xff]
    %v60 = vld [vmem:[#allocation7 + $0x18] sm:$0xff]
    %v61 = vld [vmem:[#allocation7 + $0x20] sm:$0xff]
    %v62 = vld [vmem:[#allocation7 + $0x28] sm:$0xff]
    %v63 = vld [vmem:[#allocation7 + $0x30] sm:$0xff]
    %v64 = vld [vmem:[#allocation7 + $0x38] sm:$0xff]
    %v65 = vld [vmem:[#allocation7 + $0x40] sm:$0xff]
    %v66 = vld [vmem:[#allocation7 + $0x48] sm:$0xff]
    %v67 = vld [vmem:[#allocation7 + $0x50] sm:$0xff]
    %v68 = vld [vmem:[#allocation7 + $0x58] sm:$0xff]
    %v69 = vld [vmem:[#allocation7 + $0x60] sm:$0xff]
    %v70 = vld [vmem:[#allocation7 + $0x68] sm:$0xff]
    %v71 = vld [vmem:[#allocation7 + $0x70] sm:$0xff]
    %v72 = vld [vmem:[#allocation7 + $0x78] sm:$0xff]
    %73 = vmatprep.subr.mxu0 0.0
    %74 = vmatpush1.msra.mxu0 %v72
    %75 = vmatprep.subr.mxu0 0.0
    %76 = vmatpush1.msra.mxu0 %v71
    %77 = vmatprep.subr.mxu0 0.0
    %78 = vmatpush1.msra.mxu0 %v70
    %79 = vmatprep.subr.mxu0 0.0
    %80 = vmatpush1.msra.mxu0 %v69
    %81 = vmatprep.subr.mxu0 0.0
    %82 = vmatpush1.msra.mxu0 %v68
    %83 = vmatprep.subr.mxu0 0.0
    %84 = vmatpush1.msra.mxu0 %v67
    %85 = vmatprep.subr.mxu0 0.0
    %86 = vmatpush1.msra.mxu0 %v66
    %87 = vmatprep.subr.mxu0 0.0
    %88 = vmatpush1.msra.mxu0 %v65
    %89 = vmatprep.subr.mxu0 0.0
    %90 = vmatpush1.msra.mxu0 %v64
    %91 = vmatprep.subr.mxu0 0.0
    %92 = vmatpush1.msra.mxu0 %v63
    %93 = vmatprep.subr.mxu0 0.0
    %94 = vmatpush1.msra.mxu0 %v62
    %95 = vmatprep.subr.mxu0 0.0
    %96 = vmatpush1.msra.mxu0 %v61
    %97 = vmatprep.subr.mxu0 0.0
    %98 = vmatpush1.msra.mxu0 %v60
    %99 = vmatprep.subr.mxu0 0.0
    %100 = vmatpush1.msra.mxu0 %v59
    %101 = vmatprep.subr.mxu0 0.0
    %102 = vmatpush1.msra.mxu0 %v58
    %103 = vmatprep.subr.mxu0 0.0
    %104 = vmatpush1.msra.mxu0 %v57
    %105 = vmatprep.subr.mxu0 0.0
    %106 = vmatpush2.msra.mxu0 0.0
    %107 = vmatprep.subr.mxu0 0.0
    %108 = vmatpush2.msra.mxu0 0.0
    %109 = vmatprep.subr.mxu0 0.0
    %110 = vmatpush2.msra.mxu0 0.0
    %111 = vmatprep.subr.mxu0 0.0
    %112 = vmatpush2.msra.mxu0 0.0
    %113 = vmatprep.subr.mxu0 0.0
    %114 = vmatpush2.msra.mxu0 0.0
    %115 = vmatprep.subr.mxu0 0.0
    %116 = vmatpush2.msra.mxu0 0.0
    %117 = vmatprep.subr.mxu0 0.0
    %118 = vmatpush2.msra.mxu0 0.0
    %119 = vmatprep.subr.mxu0 0.0
    %120 = vmatpush2.msra.mxu0 0.0
    %121 = vmatprep.subr.mxu0 0.0
    %122 = vmatpush2.msra.mxu0 0.0
    %123 = vmatprep.subr.mxu0 0.0
    %124 = vmatpush2.msra.mxu0 0.0
    %125 = vmatprep.subr.mxu0 0.0
    %126 = vmatpush2.msra.mxu0 0.0
    %127 = vmatprep.subr.mxu0 0.0
    %128 = vmatpush2.msra.mxu0 0.0
    %129 = vmatprep.subr.mxu0 0.0
    %130 = vmatpush2.msra.mxu0 0.0
    %131 = vmatprep.subr.mxu0 0.0
    %132 = vmatpush2.msra.mxu0 0.0
    %133 = vmatprep.subr.mxu0 0.0
    %134 = vmatpush2.msra.mxu0 0.0
    %135 = vmatprep.subr.mxu0 0.0
    %136 = vmatpush2.msra.mxu0 0.0
    %137 = vmatprep.mubr.f32.mxu0 0.0
    %138 = vmatmul.mubr.f32.gmra.mxu0 %v51
    %v139 = vpop.f32.mrf.mxu0
    %v140 = vadd.f32 0.0, %v139
    %v141 = vpop.f32.mrf.mxu0
    %142 = vmatprep.mubr.f32.mxu0 0.0
    %143 = vmatmul.mubr.f32.gmra.mxu0 %v52
    %v144 = vpop.f32.mrf.mxu0
    %v145 = vadd.f32 0.0, %v144
    %v146 = vpop.f32.mrf.mxu0
    %147 = vmatprep.mubr.f32.mxu0 0.0
    %148 = vmatmul.mubr.f32.gmra.mxu0 %v53
    %v149 = vpop.f32.mrf.mxu0
    %v150 = vadd.f32 0.0, %v149
    %v151 = vpop.f32.mrf.mxu0
    %152 = vdwg.mxu0
    %v153 = vadd.f32 %v54, %v140
    %v154 = vadd.f32 %v55, %v145
    %v155 = vadd.f32 %v56, %v150
    %156 = vst [vmem:[#allocation2] sm:$0xff] %v153
    %157 = vst [vmem:[#allocation2 + $0x8] sm:$0xff] %v154
    %158 = vst [vmem:[#allocation2 + $0x10] sm:$0xff] %v155
    %v159 = vld [vmem:[#allocation3] sm:$0xff]
    %v160 = vld [vmem:[#allocation3 + $0x8] sm:$0xff]
    %v161 = vld [vmem:[#allocation3 + $0x10] sm:$0xff]
    %162 = vadd.xlane.f32.xlu0 %v51
    %v163 = vpop.xlane.xlu0 %162
    %164 = vadd.xlane.f32.xlu0 %v52
    %v165 = vpop.xlane.xlu0 %164
    %166 = vadd.xlane.f32.xlu0 %v53
    %v167 = vpop.xlane.xlu0 %166
    %v168 = vadd.f32 %v159, %v163
    %v169 = vadd.f32 %v160, %v165
    %v170 = vadd.f32 %v161, %v167
    %vm171 = vcmask 7168
    %172 = vst.msk [vmem:[#allocation3] sm:$0xff] %vm171, %v168
    %173 = vst.msk [vmem:[#allocation3 + $0x8] sm:$0xff] %vm171, %v169
    %174 = vst.msk [vmem:[#allocation3 + $0x10] sm:$0xff] %vm171, %v170
    // Predicated region
    $region22: #{tpu_custom_call.1} parent=1 // pred_check
      %p175 = pneg %p40
    $region23: #{tpu_custom_call.1} parent=1 // pred_check_branch
      %177 = sbr.rel (%p175) target = $region25
    $region24: #{tpu_custom_call.1} parent=1 // pred_region
      %v178 = vld [vmem:[#allocation3] sm:$0xff]
      %v179 = vld [vmem:[#allocation3 + $0x8] sm:$0xff]
      %v180 = vld [vmem:[#allocation3 + $0x10] sm:$0xff]
      %vm181 = vcmp.eq.f32.partialorder %v178, 0.0
      %vm182 = vcmp.eq.f32.partialorder %v179, 0.0
      %vm183 = vcmp.eq.f32.partialorder %v180, 0.0
      %v184 = vsel %vm181, 1, 0
      %v185 = vsel %vm182, 1, 0
      %v186 = vsel %vm183, 1, 0
      %v187 = vcvt.s32.f32 %v184
      %v188 = vcvt.s32.f32 %v185
      %v189 = vcvt.s32.f32 %v186
      %v190 = vadd.f32 %v178, %v187
      %v191 = vadd.f32 %v179, %v188
      %v192 = vadd.f32 %v180, %v189
      %v193 = vrcp.pop %v190
      %v194 = vrcp.pop %v191
      %v195 = vrcp.pop %v192
      %v196 = vld [vmem:[#allocation2] sm:$0xff]
      %v197 = vld [vmem:[#allocation2 + $0x8] sm:$0xff]
      %v198 = vld [vmem:[#allocation2 + $0x10] sm:$0xff]
      %200 = vset.pattern.permute.xlu0 0
      %201 = vperm.xlu0 %200, %v193
      %v202 = vpop.permute.xlu0 %201
      %205 = vset.pattern.permute.xlu0 0
      %206 = vperm.xlu0 %205, %v194
      %v207 = vpop.permute.xlu0 %206
      %210 = vset.pattern.permute.xlu0 0
      %211 = vperm.xlu0 %210, %v195
      %v212 = vpop.permute.xlu0 %211
      %v214 = vmul.f32 %v196, %v202
      %v215 = vmul.f32 %v197, %v207
      %v216 = vmul.f32 %v198, %v212
      %217 = vst [vmem:[#allocation9] sm:$0xff] %v214
      %218 = vst [vmem:[#allocation9 + $0x8] sm:$0xff] %v215
      %219 = vst [vmem:[#allocation9 + $0x10] sm:$0xff] %v216
    $region25: #{tpu_custom_call.1} parent=1 // pred_fallthru
      _
    // Predicated region
    $region26: #{tpu_custom_call.1} parent=1 // pred_check
      _
    $region27: #{tpu_custom_call.1} parent=1 // pred_check_branch
      %221 = sbr.rel (0) target = $region29
    $region28: #{tpu_custom_call.1} parent=1 // pred_region
      %s223 = ssub.s32 384, 384
      %224 = vsyncadd [#allocation6], %s223
      %s225 = sshll.u32 [#allocation9], 4
      %s226 = int_to_ptr.vmem [resolvable:$true] %s225
      %231 = dma.vmem_to_hbm [thread:$0]  %s226, 384, %s2, [#allocation6], 128, 128, 8
    $region29: #{tpu_custom_call.1} parent=1 // pred_fallthru
      _
    // Predicated region
    $region30: #{tpu_custom_call.1} parent=1 // pred_check
      _
    $region31: #{tpu_custom_call.1} parent=1 // pred_check_branch
      %233 = sbr.rel (0) target = $region33
    $region32: #{tpu_custom_call.1} parent=1 // pred_region
      %234 = dma.done [#allocation6], 384
    $region33: #{tpu_custom_call.1} parent=1 // pred_fallthru
      _
    %235 = vsyncpa [#allocation5], 1
    %236 = vsyncpa [#allocation8], 1
    %237 = vsyncpa [#allocation6], 1

</llo_original>
